<compile_context>
chip_gen: v7x
topology: tpu7x:2x2x1
jax: 0.10.0
libtpu: 0.0.40
codegen_flags: <defaults>
</compile_context>

<pallas_src>
import functools

import numpy as np
import jax
import jax.numpy as jnp
from jax import lax
from jax.experimental import pallas as pl
from jax.experimental.pallas import tpu as pltpu


# ----------------------------- in-kernel helpers -----------------------------


def _dilated_drop_mask(seeds_p_i8, H, W, block_size):
    """Separable bs x bs max-dilation of the zero-padded seed map.

    seeds_p_i8: (H+bs-1, W+bs-1, tn) int8 padded seeds (values in {0, 1}),
    lanes = tn (the B*C axis).  Returns a bool (H, W, tn) "dropped" mask that
    matches the PyTorch scatter of bs*bs offsets into the padded mask.
    """
    bs = block_size
    # int8 -> int32 unpack once; the dilation then runs on plain 32-bit lanes
    # (robust lowering; the seed block is tiny next to the x slab).
    p = seeds_p_i8.astype(jnp.int32)
    # Vertical offsets: leading (non-vreg) axis -> just different vreg rows.
    v = p[0:H]
    for di in range(1, bs):
        v = jnp.maximum(v, p[di:di + H])
    # Horizontal offsets: sublane axis -> XLU shifts (free filler, mem-bound).
    m = v[:, 0:W]
    for dj in range(1, bs):
        m = jnp.maximum(m, v[:, dj:dj + W])
    return m > 0


# ------------------------------ Pallas kernels -------------------------------


def _mask_count_kernel(seeds_ref, cnt_ref, *, H, W, block_size):
    """Per-grid-step count of KEPT positions (no mask ever written to HBM)."""
    dropped = _dilated_drop_mask(seeds_ref[...], H, W, block_size)
    kept = jnp.sum(jnp.logical_not(dropped).astype(jnp.float32))
    cnt_ref[...] = jnp.broadcast_to(kept, (1, 8, 128))


def _apply_kernel(scale_ref, seeds_ref, x_ref, o_ref, *, H, W, block_size):
    """o = where(dropped, 0, x * scale); mask rebuilt from int8 seeds in VMEM."""
    dropped = _dilated_drop_mask(seeds_ref[...], H, W, block_size)
    x = x_ref[...]
    if x.dtype == jnp.bfloat16:
        # bf16-native VPU math on v6e/v7x; scale cast once.
        # TODO(synk): on v5e (no bf16 VPU) prefer widening to f32 here.
        y = x * scale_ref[0].astype(jnp.bfloat16)
    else:
        y = x.astype(jnp.float32) * scale_ref[0]
    o_ref[...] = jnp.where(dropped, jnp.zeros_like(y), y).astype(o_ref.dtype)


# ------------------------------ sizing helpers --------------------------------


_PALLAS_COUNT_THRESHOLD = 1 << 20  # x elements; below this, XLA handles pass 1


def _ceil_to(v, m):
    return -(-v // m) * m


def _vmem_budget_bytes():
    """Generation-aware VMEM budget (also used as vmem_limit_bytes)."""
    try:
        phys = int(pltpu.get_tpu_info().vmem_capacity_bytes)
    except Exception:
        phys = 64 * 1024 * 1024  # v7x floor; safe on every generation
    # Half the physical capacity, capped at 64 MiB: ~32 MiB on v7x, 64 MiB on
    # v5e/v6e (well above their 16/32 MiB default scoped limits).
    return max(16 * 1024 * 1024, min(phys // 2, 64 * 1024 * 1024))


def _pick_tn(N, H, W, x_itemsize, bs, vmem_budget):
    """Lanes (B*C entries) per grid step, budgeted against real VMEM."""
    Hp, Wp = H + bs - 1, W + bs - 1
    wp_tiled = _ceil_to(Wp, 32)                 # int8 sublane tile is 32 rows
    per_lane = (
        4 * H * W * x_itemsize                  # x in + y out, double-buffered
        + 2 * Hp * wp_tiled                     # int8 seed block, double-buffered
        + 4 * H * W * 4                         # i32/bool dilation temporaries
    )
    if N <= 128:
        # Cannot form a 128-lane-aligned split; take the whole lane axis.
        # TODO(synk): for tiny B*C with huge H*W, also split the leading H axis.
        return N
    cap = max(vmem_budget // per_lane, 128)     # floor at one lane tile
    tn = (min(cap, N) // 128) * 128             # multiple of 128
    # Keep >= 2 grid steps so both v7x TensorCores get work and the pipeline
    # has something to overlap with.
    half = _ceil_to((N + 1) // 2, 128)
    return max(128, min(tn, half))


# ------------------------------ Pallas wrapper --------------------------------


def dropblock_apply(x, seeds, block_size, *, force_pallas_count=False):
    """x: (B, C, H, W); seeds: (B, C, H-bs+1, W-bs+1) 0/1 Bernoulli map."""
    B, C, H, W = x.shape
    bs = block_size
    Hs, Ws = H - (bs - 1), W - (bs - 1)
    Hp, Wp = H + bs - 1, W + bs - 1
    N = B * C

    # --- lane-dense relayout: put B*C on the 128-lane (last) axis -----------
    # TODO(synk): callers holding channels-last activations could pass an
    # (H, W, B*C) layout directly and skip these two XLA transposes.
    x_t = jnp.transpose(x.reshape(N, H, W), (1, 2, 0))                 # (H, W, N)
    seeds_t = jnp.transpose(seeds.reshape(N, Hs, Ws).astype(jnp.int8), (1, 2, 0))
    # Spatial pad by bs-1 on every side so a [0,bs)^2 window-max at (h, w)
    # reproduces the PyTorch scatter of bs*bs offsets exactly.
    seeds_p = jnp.pad(seeds_t, ((bs - 1, bs - 1), (bs - 1, bs - 1), (0, 0)))

    vmem_budget = _vmem_budget_bytes()
    tn = _pick_tn(N, H, W, x.dtype.itemsize, bs, vmem_budget)
    n_steps = -(-N // tn)
    N_pad = n_steps * tn
    if N_pad != N:
        # Lane padding: pad seeds with 1 ("fully dropped") so the keep-count is
        # unchanged; padded x lanes are zero and sliced off the output.
        seeds_p = jnp.pad(seeds_p, ((0, 0), (0, 0), (0, N_pad - N)),
                          constant_values=np.int8(1))
        x_t = jnp.pad(x_t, ((0, 0), (0, 0), (0, N_pad - N)))

    cparams = pltpu.CompilerParams(
        dimension_semantics=("parallel",),
        vmem_limit_bytes=vmem_budget,
    )

    # --- pass 1: count of kept positions -> scale ---------------------------
    numel = N * H * W
    if force_pallas_count or numel > _PALLAS_COUNT_THRESHOLD:
        kernel1 = functools.partial(_mask_count_kernel, H=H, W=W, block_size=bs)
        counts = pl.pallas_call(
            kernel1,
            out_shape=jax.ShapeDtypeStruct((n_steps, 8, 128), jnp.float32),
            grid=(n_steps,),
            in_specs=[pl.BlockSpec((Hp, Wp, tn), lambda n: (0, 0, n))],
            out_specs=pl.BlockSpec((1, 8, 128), lambda n: (n, 0, 0)),
            compiler_params=cparams,
        )(seeds_p)
        kept = jnp.sum(counts[:, 0, 0])
    else:
        # Small seed maps: a single XLA reduce_window(max) beats a kernel launch.
        dil = lax.reduce_window(seeds_p.astype(jnp.float32), 0.0, lax.max,
                                (bs, bs, 1), (1, 1, 1), "VALID")       # (H, W, N_pad)
        kept = jnp.sum((dil == 0.0).astype(jnp.float32))

    # PyTorch yields inf when everything is dropped; we clamp instead.
    kept = jnp.maximum(kept, jnp.float32(1.0))
    scale = (jnp.float32(numel) / kept).reshape(1)                     # f32 (1,)

    # --- pass 2: fused mask rebuild + elementwise apply ---------------------
    # TODO(synk): if xprof shows exposed DMA on x, add pipeline_mode=pl.Buffered(3).
    kernel2 = functools.partial(_apply_kernel, H=H, W=W, block_size=bs)
    y_t = pl.pallas_call(
        kernel2,
        out_shape=jax.ShapeDtypeStruct((H, W, N_pad), x.dtype),
        grid=(n_steps,),
        in_specs=[
            pl.BlockSpec(memory_space=pltpu.MemorySpace.SMEM),         # scale
            pl.BlockSpec((Hp, Wp, tn), lambda n: (0, 0, n)),           # seeds
            pl.BlockSpec((H, W, tn), lambda n: (0, 0, n)),             # x
        ],
        out_specs=pl.BlockSpec((H, W, tn), lambda n: (0, 0, n)),
        compiler_params=cparams,
    )(scale, seeds_p, x_t)

    y_t = y_t[:, :, :N]
    return jnp.transpose(y_t, (2, 0, 1)).reshape(B, C, H, W)


# --------------------------------- module ------------------------------------


class DropBlock:
    """JAX/Pallas port of the PyTorch DropBlock module (forward, training)."""

    def __init__(self, drop_prob, block_size, warmup_steps=2500):
        self.block_size = block_size
        self.current_step = 0
        self.drop_values = np.linspace(start=1e-06, stop=drop_prob,
                                       num=int(warmup_steps))
        self.drop_prob = float(self.drop_values[0])
        self.training = True

    def step(self):
        if self.current_step < len(self.drop_values):
            self.drop_prob = float(self.drop_values[self.current_step])
            self.current_step += 1

    def _compute_gamma(self, x):
        feat_size = x.shape[2]
        gamma = (self.drop_prob / self.block_size ** 2 * feat_size ** 2
                 / (feat_size - self.block_size + 1) ** 2)
        return gamma

    def __call__(self, x, key):
        if not self.training:
            return x
        B, C, H, W = x.shape
        bs = self.block_size
        gamma = self._compute_gamma(x)
        # TODO(synk): PyTorch's Bernoulli RNG stream cannot be bit-matched;
        # seed sampling stays in plain JAX (glue, not kernel work).
        seeds = jax.random.bernoulli(
            key, gamma, (B, C, H - (bs - 1), W - (bs - 1)))
        return dropblock_apply(x, seeds, bs)


# ------------------------- pure-JAX reference check ---------------------------


def _reference_dropblock(x, seeds, block_size):
    """Literal translation of the PyTorch _compute_block_mask scatter."""
    B, C, H, W = x.shape
    bs = block_size
    Hs, Ws = seeds.shape[2], seeds.shape[3]
    left = (bs - 1) // 2
    right = bs // 2
    padded = jnp.pad(seeds, ((0, 0), (0, 0), (left, right), (left, right)))
    for di in range(bs):
        for dj in range(bs):
            canvas = jnp.pad(
                seeds,
                ((0, 0), (0, 0), (di, H - Hs - di), (dj, W - Ws - dj)))
            padded = jnp.maximum(padded, canvas)
    block_mask = 1.0 - padded
    scale = block_mask.size / jnp.sum(block_mask)
    return x * block_mask * scale


# ----------------------------------- main -------------------------------------


if __name__ == "__main__":
    key = jax.random.PRNGKey(0)
    kx, km = jax.random.split(key)

    B, C, H, W = 2, 4, 16, 16
    x = jax.random.normal(kx, (B, C, H, W), dtype=jnp.float32)

    db = DropBlock(drop_prob=0.2, block_size=3)
    # Advance the warmup schedule so drop_prob is non-trivial.
    for _ in range(1000):
        db.step()

    y = db(x, km)
    jax.block_until_ready(y)

    # Verify against a pure-JAX reference using the identical seed sample.
    bs = db.block_size
    gamma = db._compute_gamma(x)
    seeds = jax.random.bernoulli(
        km, gamma, (B, C, H - (bs - 1), W - (bs - 1)))
    y_ref = _reference_dropblock(x, seeds.astype(jnp.float32), bs)
    np.testing.assert_allclose(np.asarray(y), np.asarray(y_ref),
                               rtol=1e-5, atol=1e-5)

    # Also exercise the Pallas mask-count kernel (used for large seed maps).
    y2 = dropblock_apply(x, seeds, bs, force_pallas_count=True)
    jax.block_until_ready(y2)
    np.testing.assert_allclose(np.asarray(y2), np.asarray(y_ref),
                               rtol=1e-5, atol=1e-5)

    print("KERNEL_OK")
</pallas_src>

<mosaic_0001>
module attributes {stable_mosaic.version = 11 : i64} {
  func.func @_apply_kernel(%arg0: i32, %arg1: memref<1xf32, #tpu.memory_space<smem>>, %arg2: memref<18x18x8xi8, #tpu.memory_space<vmem>>, %arg3: memref<16x16x8xf32, #tpu.memory_space<vmem>>, %arg4: memref<16x16x8xf32, #tpu.memory_space<vmem>>) attributes {dimension_semantics = [#tpu.dimension_semantics<parallel>], iteration_bounds = array<i64: 1>, scalar_prefetch = 0 : i64, scratch_operands = 0 : i64, tpu.core_type = #tpu.core_type<tc>, window_params = [{transform_indices = @transform_0, window_bounds = array<i64: 1>}, {transform_indices = @transform_1, window_bounds = array<i64: 18, 18, 8>}, {transform_indices = @transform_2, window_bounds = array<i64: 16, 16, 8>}, {transform_indices = @transform_3, window_bounds = array<i64: 16, 16, 8>}]} {
    %c0 = arith.constant 0 : index
    %c0_0 = arith.constant 0 : index
    %c0_1 = arith.constant 0 : index
    %0 = vector.load %arg2[%c0, %c0_0, %c0_1] : memref<18x18x8xi8, #tpu.memory_space<vmem>>, vector<18x18x8xi8>
    %1 = arith.extsi %0 : vector<18x18x8xi8> to vector<18x18x8xi32>
    %2 = vector.extract_strided_slice %1 {offsets = [0, 0, 0], sizes = [16, 18, 8], strides = [1, 1, 1]} : vector<18x18x8xi32> to vector<16x18x8xi32>
    %3 = vector.extract_strided_slice %1 {offsets = [1, 0, 0], sizes = [16, 18, 8], strides = [1, 1, 1]} : vector<18x18x8xi32> to vector<16x18x8xi32>
    %4 = arith.maxsi %2, %3 : vector<16x18x8xi32>
    %5 = vector.extract_strided_slice %1 {offsets = [2, 0, 0], sizes = [16, 18, 8], strides = [1, 1, 1]} : vector<18x18x8xi32> to vector<16x18x8xi32>
    %6 = arith.maxsi %4, %5 : vector<16x18x8xi32>
    %7 = vector.extract_strided_slice %6 {offsets = [0, 0, 0], sizes = [16, 16, 8], strides = [1, 1, 1]} : vector<16x18x8xi32> to vector<16x16x8xi32>
    %8 = vector.extract_strided_slice %6 {offsets = [0, 1, 0], sizes = [16, 16, 8], strides = [1, 1, 1]} : vector<16x18x8xi32> to vector<16x16x8xi32>
    %9 = arith.maxsi %7, %8 : vector<16x16x8xi32>
    %10 = vector.extract_strided_slice %6 {offsets = [0, 2, 0], sizes = [16, 16, 8], strides = [1, 1, 1]} : vector<16x18x8xi32> to vector<16x16x8xi32>
    %11 = arith.maxsi %9, %10 : vector<16x16x8xi32>
    %c0_i32 = arith.constant 0 : i32
    %12 = vector.broadcast %c0_i32 : i32 to vector<16x16x8xi32>
    %13 = arith.cmpi sgt, %11, %12 : vector<16x16x8xi32>
    %c0_2 = arith.constant 0 : index
    %c0_3 = arith.constant 0 : index
    %c0_4 = arith.constant 0 : index
    %14 = vector.load %arg3[%c0_2, %c0_3, %c0_4] : memref<16x16x8xf32, #tpu.memory_space<vmem>>, vector<16x16x8xf32>
    %c0_5 = arith.constant 0 : index
    %15 = memref.load %arg1[%c0_5] : memref<1xf32, #tpu.memory_space<smem>>
    %16 = vector.broadcast %15 : f32 to vector<16x16x8xf32>
    %17 = arith.mulf %14, %16 : vector<16x16x8xf32>
    %cst = arith.constant 0.000000e+00 : f32
    %18 = vector.broadcast %cst : f32 to vector<16x16x8xf32>
    %19 = arith.select %13, %18, %17 : vector<16x16x8xi1>, vector<16x16x8xf32>
    %c0_6 = arith.constant 0 : index
    %c0_7 = arith.constant 0 : index
    %c0_8 = arith.constant 0 : index
    %20 = vector.load %arg4[%c0_6, %c0_7, %c0_8] : memref<16x16x8xf32, #tpu.memory_space<vmem>>, vector<16x16x8xf32>
    tpu.vector_store %arg4[%c0_6, %c0_7, %c0_8], %19 {strides = array<i32>} : memref<16x16x8xf32, #tpu.memory_space<vmem>>, vector<16x16x8xf32>,
    return
  }
  func.func @transform_0(%arg0: i32) -> i32 {
    %c0_i32 = arith.constant 0 : i32
    %c0_i32_0 = arith.constant 0 : i32
    return %c0_i32 : i32
  }
  func.func @transform_1(%arg0: i32) -> (i32, i32, i32) {
    %c0_i32 = arith.constant 0 : i32
    %c0_i32_0 = arith.constant 0 : i32
    %c0_i32_1 = arith.constant 0 : i32
    return %c0_i32, %c0_i32_0, %arg0 : i32, i32, i32
  }
  func.func @transform_2(%arg0: i32) -> (i32, i32, i32) {
    %c0_i32 = arith.constant 0 : i32
    %c0_i32_0 = arith.constant 0 : i32
    %c0_i32_1 = arith.constant 0 : i32
    return %c0_i32, %c0_i32_0, %arg0 : i32, i32, i32
  }
  func.func @transform_3(%arg0: i32) -> (i32, i32, i32) {
    %c0_i32 = arith.constant 0 : i32
    %c0_i32_0 = arith.constant 0 : i32
    %c0_i32_1 = arith.constant 0 : i32
    return %c0_i32, %c0_i32_0, %arg0 : i32, i32, i32
  }
}

</mosaic_0001>

<llo_original>
// kernel: tpu_custom_call.1
$region0: #{tpu_custom_call.1}
  #allocation0 [shape = 'u32[]', space=smem, size = 0x4, offset = 0x4, fixed_abs, tag = 'smem constant byte address 0x4 - core index']
  #allocation1 [shape = 'u32[144,128]{1,0:T(1,128)}', space=vmem, size = 0x12000, scoped, tag = 'internal scratch']
  #allocation2 [shape = 'f32[1]{0:T(128)S(6)}', space=smem, size = 0x200, scoped, tag = 'scoped memory for tpu_custom_call.1']
  %s0 = inlined_call_operand.<no memory space> [shape: f32[1], index: 0, kind: input, shape index: {}]
  %s1 = inlined_call_operand.vmem [shape: s8[18,18,8], index: 1, kind: input, shape index: {}]
  %s2 = inlined_call_operand.vmem [shape: f32[16,16,8], index: 2, kind: input, shape index: {}]
  %s3 = inlined_call_operand.vmem [shape: f32[16,16,8], index: 3, kind: output, shape index: {}]
  %s4 = sld [smem:[#allocation0]]
  $region22: #{tpu_custom_call.1} parent=0
    _
  %s6 = ssub.s32 1, %s4
  %s7 = scalar_select 0, %s6, %s4
  %8 = sst [smem:[#allocation2]] %s0
  // Predicated region
  $region2: #{tpu_custom_call.1} parent=0 // pred_check
    _
  $region3: #{tpu_custom_call.1} parent=0 // pred_check_branch
    %10 = sbr.rel (0) target = $region5
  $region4: #{tpu_custom_call.1} parent=0 // pred_region
    _
  $region5: #{tpu_custom_call.1} parent=0 // pred_fallthru
    _
  // Predicated region
  $region6: #{tpu_custom_call.1} parent=0 // pred_check
    _
  $region7: #{tpu_custom_call.1} parent=0 // pred_check_branch
    %12 = sbr.rel (0) target = $region9
  $region8: #{tpu_custom_call.1} parent=0 // pred_region
    _
  $region9: #{tpu_custom_call.1} parent=0 // pred_fallthru
    _
  // Predicated region
  $region10: #{tpu_custom_call.1} parent=0 // pred_check
    _
  $region11: #{tpu_custom_call.1} parent=0 // pred_check_branch
    %14 = sbr.rel (0) target = $region13
  $region12: #{tpu_custom_call.1} parent=0 // pred_region
    _
  $region13: #{tpu_custom_call.1} parent=0 // pred_fallthru
    _
  %v15 = vld [vmem:[%s1] sm:$0x3]
  %v16 = vld [vmem:[%s1 + $0x2] sm:$0x3]
  %v17 = vld [vmem:[%s1 + $0x4] sm:$0x1]
  %v18 = vld [vmem:[%s1 + $0x6] sm:$0x3]
  %v19 = vld [vmem:[%s1 + $0x8] sm:$0x3]
  %v20 = vld [vmem:[%s1 + $0xa] sm:$0x1]
  %v21 = vld [vmem:[%s1 + $0xc] sm:$0x3]
  %v22 = vld [vmem:[%s1 + $0xe] sm:$0x3]
  %v23 = vld [vmem:[%s1 + $0x10] sm:$0x1]
  %v24 = vld [vmem:[%s1 + $0x12] sm:$0x3]
  %v25 = vld [vmem:[%s1 + $0x14] sm:$0x3]
  %v26 = vld [vmem:[%s1 + $0x16] sm:$0x1]
  %v27 = vld [vmem:[%s1 + $0x18] sm:$0x3]
  %v28 = vld [vmem:[%s1 + $0x1a] sm:$0x3]
  %v29 = vld [vmem:[%s1 + $0x1c] sm:$0x1]
  %v30 = vld [vmem:[%s1 + $0x1e] sm:$0x3]
  %v31 = vld [vmem:[%s1 + $0x20] sm:$0x3]
  %v32 = vld [vmem:[%s1 + $0x22] sm:$0x1]
  %v33 = vld [vmem:[%s1 + $0x24] sm:$0x3]
  %v34 = vld [vmem:[%s1 + $0x26] sm:$0x3]
  %v35 = vld [vmem:[%s1 + $0x28] sm:$0x1]
  %v36 = vld [vmem:[%s1 + $0x2a] sm:$0x3]
  %v37 = vld [vmem:[%s1 + $0x2c] sm:$0x3]
  %v38 = vld [vmem:[%s1 + $0x2e] sm:$0x1]
  %v39 = vld [vmem:[%s1 + $0x30] sm:$0x3]
  %v40 = vld [vmem:[%s1 + $0x32] sm:$0x3]
  %v41 = vld [vmem:[%s1 + $0x34] sm:$0x1]
  %v42 = vld [vmem:[%s1 + $0x36] sm:$0x3]
  %v43 = vld [vmem:[%s1 + $0x38] sm:$0x3]
  %v44 = vld [vmem:[%s1 + $0x3a] sm:$0x1]
  %v45 = vld [vmem:[%s1 + $0x3c] sm:$0x3]
  %v46 = vld [vmem:[%s1 + $0x3e] sm:$0x3]
  %v47 = vld [vmem:[%s1 + $0x40] sm:$0x1]
  %v48 = vld [vmem:[%s1 + $0x42] sm:$0x3]
  %v49 = vld [vmem:[%s1 + $0x44] sm:$0x3]
  %v50 = vld [vmem:[%s1 + $0x46] sm:$0x1]
  %v51 = vld [vmem:[%s1 + $0x48] sm:$0x3]
  %v52 = vld [vmem:[%s1 + $0x4a] sm:$0x3]
  %v53 = vld [vmem:[%s1 + $0x4c] sm:$0x1]
  %v54 = vld [vmem:[%s1 + $0x4e] sm:$0x3]
  %v55 = vld [vmem:[%s1 + $0x50] sm:$0x3]
  %v56 = vld [vmem:[%s1 + $0x52] sm:$0x1]
  %v57 = vld [vmem:[%s1 + $0x54] sm:$0x3]
  %v58 = vld [vmem:[%s1 + $0x56] sm:$0x3]
  %v59 = vld [vmem:[%s1 + $0x58] sm:$0x1]
  %v60 = vld [vmem:[%s1 + $0x5a] sm:$0x3]
  %v61 = vld [vmem:[%s1 + $0x5c] sm:$0x3]
  %v62 = vld [vmem:[%s1 + $0x5e] sm:$0x1]
  %v63 = vld [vmem:[%s1 + $0x60] sm:$0x3]
  %v64 = vld [vmem:[%s1 + $0x62] sm:$0x3]
  %v65 = vld [vmem:[%s1 + $0x64] sm:$0x1]
  %v66 = vld [vmem:[%s1 + $0x66] sm:$0x3]
  %v67 = vld [vmem:[%s1 + $0x68] sm:$0x3]
  %v68 = vld [vmem:[%s1 + $0x6a] sm:$0x1]
  %v69 = vunpack.c.0.s8 %v15
  %v70 = vunpack.c.0.s8 %v16
  %v71 = vunpack.c.0.s8 %v17
  %v72 = vunpack.c.0.s8 %v18
  %v73 = vunpack.c.0.s8 %v19
  %v74 = vunpack.c.0.s8 %v20
  %v75 = vunpack.c.0.s8 %v21
  %v76 = vunpack.c.0.s8 %v22
  %v77 = vunpack.c.0.s8 %v23
  %v78 = vunpack.c.0.s8 %v24
  %v79 = vunpack.c.0.s8 %v25
  %v80 = vunpack.c.0.s8 %v26
  %v81 = vunpack.c.0.s8 %v27
  %v82 = vunpack.c.0.s8 %v28
  %v83 = vunpack.c.0.s8 %v29
  %v84 = vunpack.c.0.s8 %v30
  %v85 = vunpack.c.0.s8 %v31
  %v86 = vunpack.c.0.s8 %v32
  %v87 = vunpack.c.0.s8 %v33
  %v88 = vunpack.c.0.s8 %v34
  %v89 = vunpack.c.0.s8 %v35
  %v90 = vunpack.c.0.s8 %v36
  %v91 = vunpack.c.0.s8 %v37
  %v92 = vunpack.c.0.s8 %v38
  %v93 = vunpack.c.0.s8 %v39
  %v94 = vunpack.c.0.s8 %v40
  %v95 = vunpack.c.0.s8 %v41
  %v96 = vunpack.c.0.s8 %v42
  %v97 = vunpack.c.0.s8 %v43
  %v98 = vunpack.c.0.s8 %v44
  %v99 = vunpack.c.0.s8 %v45
  %v100 = vunpack.c.0.s8 %v46
  %v101 = vunpack.c.0.s8 %v47
  %v102 = vunpack.c.0.s8 %v48
  %v103 = vunpack.c.0.s8 %v49
  %v104 = vunpack.c.0.s8 %v50
  %v105 = vunpack.c.0.s8 %v51
  %v106 = vunpack.c.0.s8 %v52
  %v107 = vunpack.c.0.s8 %v53
  %v108 = vunpack.c.0.s8 %v54
  %v109 = vunpack.c.0.s8 %v55
  %v110 = vunpack.c.0.s8 %v56
  %v111 = vunpack.c.0.s8 %v57
  %v112 = vunpack.c.0.s8 %v58
  %v113 = vunpack.c.0.s8 %v59
  %v114 = vunpack.c.0.s8 %v60
  %v115 = vunpack.c.0.s8 %v61
  %v116 = vunpack.c.0.s8 %v62
  %v117 = vunpack.c.0.s8 %v63
  %v118 = vunpack.c.0.s8 %v64
  %v119 = vunpack.c.0.s8 %v65
  %v120 = vunpack.c.0.s8 %v66
  %v121 = vunpack.c.0.s8 %v67
  %v122 = vunpack.c.0.s8 %v68
  %vm123 = vcmp.gt.s32.totalorder %v69, %v72
  %v124 = vsel %vm123, %v69, %v72
  %vm125 = vcmp.gt.s32.totalorder %v70, %v73
  %v126 = vsel %vm125, %v70, %v73
  %vm127 = vcmp.gt.s32.totalorder %v71, %v74
  %v128 = vsel %vm127, %v71, %v74
  %vm129 = vcmp.gt.s32.totalorder %v72, %v75
  %v130 = vsel %vm129, %v72, %v75
  %vm131 = vcmp.gt.s32.totalorder %v73, %v76
  %v132 = vsel %vm131, %v73, %v76
  %vm133 = vcmp.gt.s32.totalorder %v74, %v77
  %v134 = vsel %vm133, %v74, %v77
  %vm135 = vcmp.gt.s32.totalorder %v75, %v78
  %v136 = vsel %vm135, %v75, %v78
  %vm137 = vcmp.gt.s32.totalorder %v76, %v79
  %v138 = vsel %vm137, %v76, %v79
  %vm139 = vcmp.gt.s32.totalorder %v77, %v80
  %v140 = vsel %vm139, %v77, %v80
  %vm141 = vcmp.gt.s32.totalorder %v78, %v81
  %v142 = vsel %vm141, %v78, %v81
  %vm143 = vcmp.gt.s32.totalorder %v79, %v82
  %v144 = vsel %vm143, %v79, %v82
  %vm145 = vcmp.gt.s32.totalorder %v80, %v83
  %v146 = vsel %vm145, %v80, %v83
  %vm147 = vcmp.gt.s32.totalorder %v81, %v84
  %v148 = vsel %vm147, %v81, %v84
  %vm149 = vcmp.gt.s32.totalorder %v82, %v85
  %v150 = vsel %vm149, %v82, %v85
  %vm151 = vcmp.gt.s32.totalorder %v83, %v86
  %v152 = vsel %vm151, %v83, %v86
  %vm153 = vcmp.gt.s32.totalorder %v84, %v87
  %v154 = vsel %vm153, %v84, %v87
  %vm155 = vcmp.gt.s32.totalorder %v85, %v88
  %v156 = vsel %vm155, %v85, %v88
  %vm157 = vcmp.gt.s32.totalorder %v86, %v89
  %v158 = vsel %vm157, %v86, %v89
  %vm159 = vcmp.gt.s32.totalorder %v87, %v90
  %v160 = vsel %vm159, %v87, %v90
  %vm161 = vcmp.gt.s32.totalorder %v88, %v91
  %v162 = vsel %vm161, %v88, %v91
  %vm163 = vcmp.gt.s32.totalorder %v89, %v92
  %v164 = vsel %vm163, %v89, %v92
  %vm165 = vcmp.gt.s32.totalorder %v90, %v93
  %v166 = vsel %vm165, %v90, %v93
  %vm167 = vcmp.gt.s32.totalorder %v91, %v94
  %v168 = vsel %vm167, %v91, %v94
  %vm169 = vcmp.gt.s32.totalorder %v92, %v95
  %v170 = vsel %vm169, %v92, %v95
  %vm171 = vcmp.gt.s32.totalorder %v93, %v96
  %v172 = vsel %vm171, %v93, %v96
  %vm173 = vcmp.gt.s32.totalorder %v94, %v97
  %v174 = vsel %vm173, %v94, %v97
  %vm175 = vcmp.gt.s32.totalorder %v95, %v98
  %v176 = vsel %vm175, %v95, %v98
  %vm177 = vcmp.gt.s32.totalorder %v96, %v99
  %v178 = vsel %vm177, %v96, %v99
  %vm179 = vcmp.gt.s32.totalorder %v97, %v100
  %v180 = vsel %vm179, %v97, %v100
  %vm181 = vcmp.gt.s32.totalorder %v98, %v101
  %v182 = vsel %vm181, %v98, %v101
  %vm183 = vcmp.gt.s32.totalorder %v99, %v102
  %v184 = vsel %vm183, %v99, %v102
  %vm185 = vcmp.gt.s32.totalorder %v100, %v103
  %v186 = vsel %vm185, %v100, %v103
  %vm187 = vcmp.gt.s32.totalorder %v101, %v104
  %v188 = vsel %vm187, %v101, %v104
  %vm189 = vcmp.gt.s32.totalorder %v102, %v105
  %v190 = vsel %vm189, %v102, %v105
  %vm191 = vcmp.gt.s32.totalorder %v103, %v106
  %v192 = vsel %vm191, %v103, %v106
  %vm193 = vcmp.gt.s32.totalorder %v104, %v107
  %v194 = vsel %vm193, %v104, %v107
  %vm195 = vcmp.gt.s32.totalorder %v105, %v108
  %v196 = vsel %vm195, %v105, %v108
  %vm197 = vcmp.gt.s32.totalorder %v106, %v109
  %v198 = vsel %vm197, %v106, %v109
  %vm199 = vcmp.gt.s32.totalorder %v107, %v110
  %v200 = vsel %vm199, %v107, %v110
  %vm201 = vcmp.gt.s32.totalorder %v108, %v111
  %v202 = vsel %vm201, %v108, %v111
  %vm203 = vcmp.gt.s32.totalorder %v109, %v112
  %v204 = vsel %vm203, %v109, %v112
  %vm205 = vcmp.gt.s32.totalorder %v110, %v113
  %v206 = vsel %vm205, %v110, %v113
  %vm207 = vcmp.gt.s32.totalorder %v111, %v114
  %v208 = vsel %vm207, %v111, %v114
  %vm209 = vcmp.gt.s32.totalorder %v112, %v115
  %v210 = vsel %vm209, %v112, %v115
  %vm211 = vcmp.gt.s32.totalorder %v113, %v116
  %v212 = vsel %vm211, %v113, %v116
  %vm213 = vcmp.gt.s32.totalorder %v114, %v117
  %v214 = vsel %vm213, %v114, %v117
  %vm215 = vcmp.gt.s32.totalorder %v115, %v118
  %v216 = vsel %vm215, %v115, %v118
  %vm217 = vcmp.gt.s32.totalorder %v116, %v119
  %v218 = vsel %vm217, %v116, %v119
  %vm219 = vcmp.gt.s32.totalorder %v124, %v75
  %v220 = vsel %vm219, %v124, %v75
  %vm221 = vcmp.gt.s32.totalorder %v126, %v76
  %v222 = vsel %vm221, %v126, %v76
  %vm223 = vcmp.gt.s32.totalorder %v128, %v77
  %v224 = vsel %vm223, %v128, %v77
  %vm225 = vcmp.gt.s32.totalorder %v130, %v78
  %v226 = vsel %vm225, %v130, %v78
  %vm227 = vcmp.gt.s32.totalorder %v132, %v79
  %v228 = vsel %vm227, %v132, %v79
  %vm229 = vcmp.gt.s32.totalorder %v134, %v80
  %v230 = vsel %vm229, %v134, %v80
  %vm231 = vcmp.gt.s32.totalorder %v136, %v81
  %v232 = vsel %vm231, %v136, %v81
  %vm233 = vcmp.gt.s32.totalorder %v138, %v82
  %v234 = vsel %vm233, %v138, %v82
  %vm235 = vcmp.gt.s32.totalorder %v140, %v83
  %v236 = vsel %vm235, %v140, %v83
  %vm237 = vcmp.gt.s32.totalorder %v142, %v84
  %v238 = vsel %vm237, %v142, %v84
  %vm239 = vcmp.gt.s32.totalorder %v144, %v85
  %v240 = vsel %vm239, %v144, %v85
  %vm241 = vcmp.gt.s32.totalorder %v146, %v86
  %v242 = vsel %vm241, %v146, %v86
  %vm243 = vcmp.gt.s32.totalorder %v148, %v87
  %v244 = vsel %vm243, %v148, %v87
  %vm245 = vcmp.gt.s32.totalorder %v150, %v88
  %v246 = vsel %vm245, %v150, %v88
  %vm247 = vcmp.gt.s32.totalorder %v152, %v89
  %v248 = vsel %vm247, %v152, %v89
  %vm249 = vcmp.gt.s32.totalorder %v154, %v90
  %v250 = vsel %vm249, %v154, %v90
  %vm251 = vcmp.gt.s32.totalorder %v156, %v91
  %v252 = vsel %vm251, %v156, %v91
  %vm253 = vcmp.gt.s32.totalorder %v158, %v92
  %v254 = vsel %vm253, %v158, %v92
  %vm255 = vcmp.gt.s32.totalorder %v160, %v93
  %v256 = vsel %vm255, %v160, %v93
  %vm257 = vcmp.gt.s32.totalorder %v162, %v94
  %v258 = vsel %vm257, %v162, %v94
  %vm259 = vcmp.gt.s32.totalorder %v164, %v95
  %v260 = vsel %vm259, %v164, %v95
  %vm261 = vcmp.gt.s32.totalorder %v166, %v96
  %v262 = vsel %vm261, %v166, %v96
  %vm263 = vcmp.gt.s32.totalorder %v168, %v97
  %v264 = vsel %vm263, %v168, %v97
  %vm265 = vcmp.gt.s32.totalorder %v170, %v98
  %v266 = vsel %vm265, %v170, %v98
  %vm267 = vcmp.gt.s32.totalorder %v172, %v99
  %v268 = vsel %vm267, %v172, %v99
  %vm269 = vcmp.gt.s32.totalorder %v174, %v100
  %v270 = vsel %vm269, %v174, %v100
  %vm271 = vcmp.gt.s32.totalorder %v176, %v101
  %v272 = vsel %vm271, %v176, %v101
  %vm273 = vcmp.gt.s32.totalorder %v178, %v102
  %v274 = vsel %vm273, %v178, %v102
  %vm275 = vcmp.gt.s32.totalorder %v180, %v103
  %v276 = vsel %vm275, %v180, %v103
  %vm277 = vcmp.gt.s32.totalorder %v182, %v104
  %v278 = vsel %vm277, %v182, %v104
  %vm279 = vcmp.gt.s32.totalorder %v184, %v105
  %v280 = vsel %vm279, %v184, %v105
  %vm281 = vcmp.gt.s32.totalorder %v186, %v106
  %v282 = vsel %vm281, %v186, %v106
  %vm283 = vcmp.gt.s32.totalorder %v188, %v107
  %v284 = vsel %vm283, %v188, %v107
  %vm285 = vcmp.gt.s32.totalorder %v190, %v108
  %v286 = vsel %vm285, %v190, %v108
  %vm287 = vcmp.gt.s32.totalorder %v192, %v109
  %v288 = vsel %vm287, %v192, %v109
  %vm289 = vcmp.gt.s32.totalorder %v194, %v110
  %v290 = vsel %vm289, %v194, %v110
  %vm291 = vcmp.gt.s32.totalorder %v196, %v111
  %v292 = vsel %vm291, %v196, %v111
  %vm293 = vcmp.gt.s32.totalorder %v198, %v112
  %v294 = vsel %vm293, %v198, %v112
  %vm295 = vcmp.gt.s32.totalorder %v200, %v113
  %v296 = vsel %vm295, %v200, %v113
  %vm297 = vcmp.gt.s32.totalorder %v202, %v114
  %v298 = vsel %vm297, %v202, %v114
  %vm299 = vcmp.gt.s32.totalorder %v204, %v115
  %v300 = vsel %vm299, %v204, %v115
  %vm301 = vcmp.gt.s32.totalorder %v206, %v116
  %v302 = vsel %vm301, %v206, %v116
  %vm303 = vcmp.gt.s32.totalorder %v208, %v117
  %v304 = vsel %vm303, %v208, %v117
  %vm305 = vcmp.gt.s32.totalorder %v210, %v118
  %v306 = vsel %vm305, %v210, %v118
  %vm307 = vcmp.gt.s32.totalorder %v212, %v119
  %v308 = vsel %vm307, %v212, %v119
  %vm309 = vcmp.gt.s32.totalorder %v214, %v120
  %v310 = vsel %vm309, %v214, %v120
  %vm311 = vcmp.gt.s32.totalorder %v216, %v121
  %v312 = vsel %vm311, %v216, %v121
  %vm313 = vcmp.gt.s32.totalorder %v218, %v122
  %v314 = vsel %vm313, %v218, %v122
  %vm315 = vcmask 1046528
  %v316 = vrot.slane %v220, 1
  %v317 = vrot.slane %v222, 1
  %v318 = vsel %vm315, %v316, %v317
  %v319 = vrot.slane %v224, 1
  %v320 = vsel %vm315, %v317, %v319
  %v321 = vrot.slane %v226, 1
  %v322 = vrot.slane %v228, 1
  %v323 = vsel %vm315, %v321, %v322
  %v324 = vrot.slane %v230, 1
  %v325 = vsel %vm315, %v322, %v324
  %v326 = vrot.slane %v232, 1
  %v327 = vrot.slane %v234, 1
  %v328 = vsel %vm315, %v326, %v327
  %v329 = vrot.slane %v236, 1
  %v330 = vsel %vm315, %v327, %v329
  %v331 = vrot.slane %v238, 1
  %v332 = vrot.slane %v240, 1
  %v333 = vsel %vm315, %v331, %v332
  %v334 = vrot.slane %v242, 1
  %v335 = vsel %vm315, %v332, %v334
  %v336 = vrot.slane %v244, 1
  %v337 = vrot.slane %v246, 1
  %v338 = vsel %vm315, %v336, %v337
  %v339 = vrot.slane %v248, 1
  %v340 = vsel %vm315, %v337, %v339
  %v341 = vrot.slane %v250, 1
  %v342 = vrot.slane %v252, 1
  %v343 = vsel %vm315, %v341, %v342
  %v344 = vrot.slane %v254, 1
  %v345 = vsel %vm315, %v342, %v344
  %v346 = vrot.slane %v256, 1
  %v347 = vrot.slane %v258, 1
  %v348 = vsel %vm315, %v346, %v347
  %v349 = vrot.slane %v260, 1
  %v350 = vsel %vm315, %v347, %v349
  %v351 = vrot.slane %v262, 1
  %v352 = vrot.slane %v264, 1
  %v353 = vsel %vm315, %v351, %v352
  %v354 = vrot.slane %v266, 1
  %v355 = vsel %vm315, %v352, %v354
  %v356 = vrot.slane %v268, 1
  %v357 = vrot.slane %v270, 1
  %v358 = vsel %vm315, %v356, %v357
  %v359 = vrot.slane %v272, 1
  %v360 = vsel %vm315, %v357, %v359
  %v361 = vrot.slane %v274, 1
  %v362 = vrot.slane %v276, 1
  %v363 = vsel %vm315, %v361, %v362
  %v364 = vrot.slane %v278, 1
  %v365 = vsel %vm315, %v362, %v364
  %v366 = vrot.slane %v280, 1
  %v367 = vrot.slane %v282, 1
  %v368 = vsel %vm315, %v366, %v367
  %v369 = vrot.slane %v284, 1
  %v370 = vsel %vm315, %v367, %v369
  %v371 = vrot.slane %v286, 1
  %v372 = vrot.slane %v288, 1
  %v373 = vsel %vm315, %v371, %v372
  %v374 = vrot.slane %v290, 1
  %v375 = vsel %vm315, %v372, %v374
  %v376 = vrot.slane %v292, 1
  %v377 = vrot.slane %v294, 1
  %v378 = vsel %vm315, %v376, %v377
  %v379 = vrot.slane %v296, 1
  %v380 = vsel %vm315, %v377, %v379
  %v381 = vrot.slane %v298, 1
  %v382 = vrot.slane %v300, 1
  %v383 = vsel %vm315, %v381, %v382
  %v384 = vrot.slane %v302, 1
  %v385 = vsel %vm315, %v382, %v384
  %v386 = vrot.slane %v304, 1
  %v387 = vrot.slane %v306, 1
  %v388 = vsel %vm315, %v386, %v387
  %v389 = vrot.slane %v308, 1
  %v390 = vsel %vm315, %v387, %v389
  %v391 = vrot.slane %v310, 1
  %v392 = vrot.slane %v312, 1
  %v393 = vsel %vm315, %v391, %v392
  %v394 = vrot.slane %v314, 1
  %v395 = vsel %vm315, %v392, %v394
  %vm396 = vcmp.gt.s32.totalorder %v220, %v318
  %v397 = vsel %vm396, %v220, %v318
  %vm398 = vcmp.gt.s32.totalorder %v222, %v320
  %v399 = vsel %vm398, %v222, %v320
  %vm400 = vcmp.gt.s32.totalorder %v226, %v323
  %v401 = vsel %vm400, %v226, %v323
  %vm402 = vcmp.gt.s32.totalorder %v228, %v325
  %v403 = vsel %vm402, %v228, %v325
  %vm404 = vcmp.gt.s32.totalorder %v232, %v328
  %v405 = vsel %vm404, %v232, %v328
  %vm406 = vcmp.gt.s32.totalorder %v234, %v330
  %v407 = vsel %vm406, %v234, %v330
  %vm408 = vcmp.gt.s32.totalorder %v238, %v333
  %v409 = vsel %vm408, %v238, %v333
  %vm410 = vcmp.gt.s32.totalorder %v240, %v335
  %v411 = vsel %vm410, %v240, %v335
  %vm412 = vcmp.gt.s32.totalorder %v244, %v338
  %v413 = vsel %vm412, %v244, %v338
  %vm414 = vcmp.gt.s32.totalorder %v246, %v340
  %v415 = vsel %vm414, %v246, %v340
  %vm416 = vcmp.gt.s32.totalorder %v250, %v343
  %v417 = vsel %vm416, %v250, %v343
  %vm418 = vcmp.gt.s32.totalorder %v252, %v345
  %v419 = vsel %vm418, %v252, %v345
  %vm420 = vcmp.gt.s32.totalorder %v256, %v348
  %v421 = vsel %vm420, %v256, %v348
  %vm422 = vcmp.gt.s32.totalorder %v258, %v350
  %v423 = vsel %vm422, %v258, %v350
  %vm424 = vcmp.gt.s32.totalorder %v262, %v353
  %v425 = vsel %vm424, %v262, %v353
  %vm426 = vcmp.gt.s32.totalorder %v264, %v355
  %v427 = vsel %vm426, %v264, %v355
  %vm428 = vcmp.gt.s32.totalorder %v268, %v358
  %v429 = vsel %vm428, %v268, %v358
  %vm430 = vcmp.gt.s32.totalorder %v270, %v360
  %v431 = vsel %vm430, %v270, %v360
  %vm432 = vcmp.gt.s32.totalorder %v274, %v363
  %v433 = vsel %vm432, %v274, %v363
  %vm434 = vcmp.gt.s32.totalorder %v276, %v365
  %v435 = vsel %vm434, %v276, %v365
  %vm436 = vcmp.gt.s32.totalorder %v280, %v368
  %v437 = vsel %vm436, %v280, %v368
  %vm438 = vcmp.gt.s32.totalorder %v282, %v370
  %v439 = vsel %vm438, %v282, %v370
  %vm440 = vcmp.gt.s32.totalorder %v286, %v373
  %v441 = vsel %vm440, %v286, %v373
  %vm442 = vcmp.gt.s32.totalorder %v288, %v375
  %v443 = vsel %vm442, %v288, %v375
  %vm444 = vcmp.gt.s32.totalorder %v292, %v378
  %v445 = vsel %vm444, %v292, %v378
  %vm446 = vcmp.gt.s32.totalorder %v294, %v380
  %v447 = vsel %vm446, %v294, %v380
  %vm448 = vcmp.gt.s32.totalorder %v298, %v383
  %v449 = vsel %vm448, %v298, %v383
  %vm450 = vcmp.gt.s32.totalorder %v300, %v385
  %v451 = vsel %vm450, %v300, %v385
  %vm452 = vcmp.gt.s32.totalorder %v304, %v388
  %v453 = vsel %vm452, %v304, %v388
  %vm454 = vcmp.gt.s32.totalorder %v306, %v390
  %v455 = vsel %vm454, %v306, %v390
  %vm456 = vcmp.gt.s32.totalorder %v310, %v393
  %v457 = vsel %vm456, %v310, %v393
  %vm458 = vcmp.gt.s32.totalorder %v312, %v395
  %v459 = vsel %vm458, %v312, %v395
  %vm460 = vcmask 1045504
  %v461 = vrot.slane %v220, 2
  %v462 = vrot.slane %v222, 2
  %v463 = vsel %vm460, %v461, %v462
  %v464 = vrot.slane %v224, 2
  %v465 = vsel %vm460, %v462, %v464
  %v466 = vrot.slane %v226, 2
  %v467 = vrot.slane %v228, 2
  %v468 = vsel %vm460, %v466, %v467
  %v469 = vrot.slane %v230, 2
  %v470 = vsel %vm460, %v467, %v469
  %v471 = vrot.slane %v232, 2
  %v472 = vrot.slane %v234, 2
  %v473 = vsel %vm460, %v471, %v472
  %v474 = vrot.slane %v236, 2
  %v475 = vsel %vm460, %v472, %v474
  %v476 = vrot.slane %v238, 2
  %v477 = vrot.slane %v240, 2
  %v478 = vsel %vm460, %v476, %v477
  %v479 = vrot.slane %v242, 2
  %v480 = vsel %vm460, %v477, %v479
  %v481 = vrot.slane %v244, 2
  %v482 = vrot.slane %v246, 2
  %v483 = vsel %vm460, %v481, %v482
  %v484 = vrot.slane %v248, 2
  %v485 = vsel %vm460, %v482, %v484
  %v486 = vrot.slane %v250, 2
  %v487 = vrot.slane %v252, 2
  %v488 = vsel %vm460, %v486, %v487
  %v489 = vrot.slane %v254, 2
  %v490 = vsel %vm460, %v487, %v489
  %v491 = vrot.slane %v256, 2
  %v492 = vrot.slane %v258, 2
  %v493 = vsel %vm460, %v491, %v492
  %v494 = vrot.slane %v260, 2
  %v495 = vsel %vm460, %v492, %v494
  %v496 = vrot.slane %v262, 2
  %v497 = vrot.slane %v264, 2
  %v498 = vsel %vm460, %v496, %v497
  %v499 = vrot.slane %v266, 2
  %v500 = vsel %vm460, %v497, %v499
  %v501 = vrot.slane %v268, 2
  %v502 = vrot.slane %v270, 2
  %v503 = vsel %vm460, %v501, %v502
  %v504 = vrot.slane %v272, 2
  %v505 = vsel %vm460, %v502, %v504
  %v506 = vrot.slane %v274, 2
  %v507 = vrot.slane %v276, 2
  %v508 = vsel %vm460, %v506, %v507
  %v509 = vrot.slane %v278, 2
  %v510 = vsel %vm460, %v507, %v509
  %v511 = vrot.slane %v280, 2
  %v512 = vrot.slane %v282, 2
  %v513 = vsel %vm460, %v511, %v512
  %v514 = vrot.slane %v284, 2
  %v515 = vsel %vm460, %v512, %v514
  %v516 = vrot.slane %v286, 2
  %v517 = vrot.slane %v288, 2
  %v518 = vsel %vm460, %v516, %v517
  %v519 = vrot.slane %v290, 2
  %v520 = vsel %vm460, %v517, %v519
  %v521 = vrot.slane %v292, 2
  %v522 = vrot.slane %v294, 2
  %v523 = vsel %vm460, %v521, %v522
  %v524 = vrot.slane %v296, 2
  %v525 = vsel %vm460, %v522, %v524
  %v526 = vrot.slane %v298, 2
  %v527 = vrot.slane %v300, 2
  %v528 = vsel %vm460, %v526, %v527
  %v529 = vrot.slane %v302, 2
  %v530 = vsel %vm460, %v527, %v529
  %v531 = vrot.slane %v304, 2
  %v532 = vrot.slane %v306, 2
  %v533 = vsel %vm460, %v531, %v532
  %v534 = vrot.slane %v308, 2
  %v535 = vsel %vm460, %v532, %v534
  %v536 = vrot.slane %v310, 2
  %v537 = vrot.slane %v312, 2
  %v538 = vsel %vm460, %v536, %v537
  %v539 = vrot.slane %v314, 2
  %v540 = vsel %vm460, %v537, %v539
  %vm541 = vcmp.gt.s32.totalorder %v397, %v463
  %v542 = vsel %vm541, %v397, %v463
  %vm543 = vcmp.gt.s32.totalorder %v399, %v465
  %v544 = vsel %vm543, %v399, %v465
  %vm545 = vcmp.gt.s32.totalorder %v401, %v468
  %v546 = vsel %vm545, %v401, %v468
  %vm547 = vcmp.gt.s32.totalorder %v403, %v470
  %v548 = vsel %vm547, %v403, %v470
  %vm549 = vcmp.gt.s32.totalorder %v405, %v473
  %v550 = vsel %vm549, %v405, %v473
  %vm551 = vcmp.gt.s32.totalorder %v407, %v475
  %v552 = vsel %vm551, %v407, %v475
  %vm553 = vcmp.gt.s32.totalorder %v409, %v478
  %v554 = vsel %vm553, %v409, %v478
  %vm555 = vcmp.gt.s32.totalorder %v411, %v480
  %v556 = vsel %vm555, %v411, %v480
  %vm557 = vcmp.gt.s32.totalorder %v413, %v483
  %v558 = vsel %vm557, %v413, %v483
  %vm559 = vcmp.gt.s32.totalorder %v415, %v485
  %v560 = vsel %vm559, %v415, %v485
  %vm561 = vcmp.gt.s32.totalorder %v417, %v488
  %v562 = vsel %vm561, %v417, %v488
  %vm563 = vcmp.gt.s32.totalorder %v419, %v490
  %v564 = vsel %vm563, %v419, %v490
  %vm565 = vcmp.gt.s32.totalorder %v421, %v493
  %v566 = vsel %vm565, %v421, %v493
  %vm567 = vcmp.gt.s32.totalorder %v423, %v495
  %v568 = vsel %vm567, %v423, %v495
  %vm569 = vcmp.gt.s32.totalorder %v425, %v498
  %v570 = vsel %vm569, %v425, %v498
  %vm571 = vcmp.gt.s32.totalorder %v427, %v500
  %v572 = vsel %vm571, %v427, %v500
  %vm573 = vcmp.gt.s32.totalorder %v429, %v503
  %v574 = vsel %vm573, %v429, %v503
  %vm575 = vcmp.gt.s32.totalorder %v431, %v505
  %v576 = vsel %vm575, %v431, %v505
  %vm577 = vcmp.gt.s32.totalorder %v433, %v508
  %v578 = vsel %vm577, %v433, %v508
  %vm579 = vcmp.gt.s32.totalorder %v435, %v510
  %v580 = vsel %vm579, %v435, %v510
  %vm581 = vcmp.gt.s32.totalorder %v437, %v513
  %v582 = vsel %vm581, %v437, %v513
  %vm583 = vcmp.gt.s32.totalorder %v439, %v515
  %v584 = vsel %vm583, %v439, %v515
  %vm585 = vcmp.gt.s32.totalorder %v441, %v518
  %v586 = vsel %vm585, %v441, %v518
  %vm587 = vcmp.gt.s32.totalorder %v443, %v520
  %v588 = vsel %vm587, %v443, %v520
  %vm589 = vcmp.gt.s32.totalorder %v445, %v523
  %v590 = vsel %vm589, %v445, %v523
  %vm591 = vcmp.gt.s32.totalorder %v447, %v525
  %v592 = vsel %vm591, %v447, %v525
  %vm593 = vcmp.gt.s32.totalorder %v449, %v528
  %v594 = vsel %vm593, %v449, %v528
  %vm595 = vcmp.gt.s32.totalorder %v451, %v530
  %v596 = vsel %vm595, %v451, %v530
  %vm597 = vcmp.gt.s32.totalorder %v453, %v533
  %v598 = vsel %vm597, %v453, %v533
  %vm599 = vcmp.gt.s32.totalorder %v455, %v535
  %v600 = vsel %vm599, %v455, %v535
  %vm601 = vcmp.gt.s32.totalorder %v457, %v538
  %v602 = vsel %vm601, %v457, %v538
  %vm603 = vcmp.gt.s32.totalorder %v459, %v540
  %v604 = vsel %vm603, %v459, %v540
  %vm605 = vcmp.gt.s32.totalorder %v542, 0
  %vm606 = vcmp.gt.s32.totalorder %v544, 0
  %vm607 = vcmp.gt.s32.totalorder %v546, 0
  %vm608 = vcmp.gt.s32.totalorder %v548, 0
  %vm609 = vcmp.gt.s32.totalorder %v550, 0
  %vm610 = vcmp.gt.s32.totalorder %v552, 0
  %vm611 = vcmp.gt.s32.totalorder %v554, 0
  %vm612 = vcmp.gt.s32.totalorder %v556, 0
  %vm613 = vcmp.gt.s32.totalorder %v558, 0
  %vm614 = vcmp.gt.s32.totalorder %v560, 0
  %vm615 = vcmp.gt.s32.totalorder %v562, 0
  %vm616 = vcmp.gt.s32.totalorder %v564, 0
  %vm617 = vcmp.gt.s32.totalorder %v566, 0
  %vm618 = vcmp.gt.s32.totalorder %v568, 0
  %vm619 = vcmp.gt.s32.totalorder %v570, 0
  %vm620 = vcmp.gt.s32.totalorder %v572, 0
  %vm621 = vcmp.gt.s32.totalorder %v574, 0
  %vm622 = vcmp.gt.s32.totalorder %v576, 0
  %vm623 = vcmp.gt.s32.totalorder %v578, 0
  %vm624 = vcmp.gt.s32.totalorder %v580, 0
  %vm625 = vcmp.gt.s32.totalorder %v582, 0
  %vm626 = vcmp.gt.s32.totalorder %v584, 0
  %vm627 = vcmp.gt.s32.totalorder %v586, 0
  %vm628 = vcmp.gt.s32.totalorder %v588, 0
  %vm629 = vcmp.gt.s32.totalorder %v590, 0
  %vm630 = vcmp.gt.s32.totalorder %v592, 0
  %vm631 = vcmp.gt.s32.totalorder %v594, 0
  %vm632 = vcmp.gt.s32.totalorder %v596, 0
  %vm633 = vcmp.gt.s32.totalorder %v598, 0
  %vm634 = vcmp.gt.s32.totalorder %v600, 0
  %vm635 = vcmp.gt.s32.totalorder %v602, 0
  %vm636 = vcmp.gt.s32.totalorder %v604, 0
  %v637 = vld [vmem:[%s2] sm:$0xff]
  %v638 = vld [vmem:[%s2 + $0x8] sm:$0xff]
  %v639 = vld [vmem:[%s2 + $0x10] sm:$0xff]
  %v640 = vld [vmem:[%s2 + $0x18] sm:$0xff]
  %v641 = vld [vmem:[%s2 + $0x20] sm:$0xff]
  %v642 = vld [vmem:[%s2 + $0x28] sm:$0xff]
  %v643 = vld [vmem:[%s2 + $0x30] sm:$0xff]
  %v644 = vld [vmem:[%s2 + $0x38] sm:$0xff]
  %v645 = vld [vmem:[%s2 + $0x40] sm:$0xff]
  %v646 = vld [vmem:[%s2 + $0x48] sm:$0xff]
  %v647 = vld [vmem:[%s2 + $0x50] sm:$0xff]
  %v648 = vld [vmem:[%s2 + $0x58] sm:$0xff]
  %v649 = vld [vmem:[%s2 + $0x60] sm:$0xff]
  %v650 = vld [vmem:[%s2 + $0x68] sm:$0xff]
  %v651 = vld [vmem:[%s2 + $0x70] sm:$0xff]
  %v652 = vld [vmem:[%s2 + $0x78] sm:$0xff]
  %v653 = vld [vmem:[%s2 + $0x80] sm:$0xff]
  %v654 = vld [vmem:[%s2 + $0x88] sm:$0xff]
  %v655 = vld [vmem:[%s2 + $0x90] sm:$0xff]
  %v656 = vld [vmem:[%s2 + $0x98] sm:$0xff]
  %v657 = vld [vmem:[%s2 + $0xa0] sm:$0xff]
  %v658 = vld [vmem:[%s2 + $0xa8] sm:$0xff]
  %v659 = vld [vmem:[%s2 + $0xb0] sm:$0xff]
  %v660 = vld [vmem:[%s2 + $0xb8] sm:$0xff]
  %v661 = vld [vmem:[%s2 + $0xc0] sm:$0xff]
  %v662 = vld [vmem:[%s2 + $0xc8] sm:$0xff]
  %v663 = vld [vmem:[%s2 + $0xd0] sm:$0xff]
  %v664 = vld [vmem:[%s2 + $0xd8] sm:$0xff]
  %v665 = vld [vmem:[%s2 + $0xe0] sm:$0xff]
  %v666 = vld [vmem:[%s2 + $0xe8] sm:$0xff]
  %v667 = vld [vmem:[%s2 + $0xf0] sm:$0xff]
  %v668 = vld [vmem:[%s2 + $0xf8] sm:$0xff]
  %s669 = sld [smem:[#allocation2]]
  %v670 = vstv %s669
  %v671 = vmul.f32 %v637, %v670
  %v672 = vmul.f32 %v638, %v670
  %v673 = vmul.f32 %v639, %v670
  %v674 = vmul.f32 %v640, %v670
  %v675 = vmul.f32 %v641, %v670
  %v676 = vmul.f32 %v642, %v670
  %v677 = vmul.f32 %v643, %v670
  %v678 = vmul.f32 %v644, %v670
  %v679 = vmul.f32 %v645, %v670
  %v680 = vmul.f32 %v646, %v670
  %v681 = vmul.f32 %v647, %v670
  %v682 = vmul.f32 %v648, %v670
  %v683 = vmul.f32 %v649, %v670
  %v684 = vmul.f32 %v650, %v670
  %v685 = vmul.f32 %v651, %v670
  %v686 = vmul.f32 %v652, %v670
  %v687 = vmul.f32 %v653, %v670
  %v688 = vmul.f32 %v654, %v670
  %v689 = vmul.f32 %v655, %v670
  %v690 = vmul.f32 %v656, %v670
  %v691 = vmul.f32 %v657, %v670
  %v692 = vmul.f32 %v658, %v670
  %v693 = vmul.f32 %v659, %v670
  %v694 = vmul.f32 %v660, %v670
  %v695 = vmul.f32 %v661, %v670
  %v696 = vmul.f32 %v662, %v670
  %v697 = vmul.f32 %v663, %v670
  %v698 = vmul.f32 %v664, %v670
  %v699 = vmul.f32 %v665, %v670
  %v700 = vmul.f32 %v666, %v670
  %v701 = vmul.f32 %v667, %v670
  %v702 = vmul.f32 %v668, %v670
  %v703 = vsel %vm605, 0.0, %v671
  %v704 = vsel %vm606, 0.0, %v672
  %v705 = vsel %vm607, 0.0, %v673
  %v706 = vsel %vm608, 0.0, %v674
  %v707 = vsel %vm609, 0.0, %v675
  %v708 = vsel %vm610, 0.0, %v676
  %v709 = vsel %vm611, 0.0, %v677
  %v710 = vsel %vm612, 0.0, %v678
  %v711 = vsel %vm613, 0.0, %v679
  %v712 = vsel %vm614, 0.0, %v680
  %v713 = vsel %vm615, 0.0, %v681
  %v714 = vsel %vm616, 0.0, %v682
  %v715 = vsel %vm617, 0.0, %v683
  %v716 = vsel %vm618, 0.0, %v684
  %v717 = vsel %vm619, 0.0, %v685
  %v718 = vsel %vm620, 0.0, %v686
  %v719 = vsel %vm621, 0.0, %v687
  %v720 = vsel %vm622, 0.0, %v688
  %v721 = vsel %vm623, 0.0, %v689
  %v722 = vsel %vm624, 0.0, %v690
  %v723 = vsel %vm625, 0.0, %v691
  %v724 = vsel %vm626, 0.0, %v692
  %v725 = vsel %vm627, 0.0, %v693
  %v726 = vsel %vm628, 0.0, %v694
  %v727 = vsel %vm629, 0.0, %v695
  %v728 = vsel %vm630, 0.0, %v696
  %v729 = vsel %vm631, 0.0, %v697
  %v730 = vsel %vm632, 0.0, %v698
  %v731 = vsel %vm633, 0.0, %v699
  %v732 = vsel %vm634, 0.0, %v700
  %v733 = vsel %vm635, 0.0, %v701
  %v734 = vsel %vm636, 0.0, %v702
  %vm735 = vcmask 64512
  %736 = vst.msk [vmem:[%s3] sm:$0xff] %vm735, %v703
  %737 = vst.msk [vmem:[%s3 + $0x8] sm:$0xff] %vm735, %v704
  %738 = vst.msk [vmem:[%s3 + $0x10] sm:$0xff] %vm735, %v705
  %739 = vst.msk [vmem:[%s3 + $0x18] sm:$0xff] %vm735, %v706
  %740 = vst.msk [vmem:[%s3 + $0x20] sm:$0xff] %vm735, %v707
  %741 = vst.msk [vmem:[%s3 + $0x28] sm:$0xff] %vm735, %v708
  %742 = vst.msk [vmem:[%s3 + $0x30] sm:$0xff] %vm735, %v709
  %743 = vst.msk [vmem:[%s3 + $0x38] sm:$0xff] %vm735, %v710
  %744 = vst.msk [vmem:[%s3 + $0x40] sm:$0xff] %vm735, %v711
  %745 = vst.msk [vmem:[%s3 + $0x48] sm:$0xff] %vm735, %v712
  %746 = vst.msk [vmem:[%s3 + $0x50] sm:$0xff] %vm735, %v713
  %747 = vst.msk [vmem:[%s3 + $0x58] sm:$0xff] %vm735, %v714
  %748 = vst.msk [vmem:[%s3 + $0x60] sm:$0xff] %vm735, %v715
  %749 = vst.msk [vmem:[%s3 + $0x68] sm:$0xff] %vm735, %v716
  %750 = vst.msk [vmem:[%s3 + $0x70] sm:$0xff] %vm735, %v717
  %751 = vst.msk [vmem:[%s3 + $0x78] sm:$0xff] %vm735, %v718
  %752 = vst.msk [vmem:[%s3 + $0x80] sm:$0xff] %vm735, %v719
  %753 = vst.msk [vmem:[%s3 + $0x88] sm:$0xff] %vm735, %v720
  %754 = vst.msk [vmem:[%s3 + $0x90] sm:$0xff] %vm735, %v721
  %755 = vst.msk [vmem:[%s3 + $0x98] sm:$0xff] %vm735, %v722
  %756 = vst.msk [vmem:[%s3 + $0xa0] sm:$0xff] %vm735, %v723
  %757 = vst.msk [vmem:[%s3 + $0xa8] sm:$0xff] %vm735, %v724
  %758 = vst.msk [vmem:[%s3 + $0xb0] sm:$0xff] %vm735, %v725
  %759 = vst.msk [vmem:[%s3 + $0xb8] sm:$0xff] %vm735, %v726
  %760 = vst.msk [vmem:[%s3 + $0xc0] sm:$0xff] %vm735, %v727
  %761 = vst.msk [vmem:[%s3 + $0xc8] sm:$0xff] %vm735, %v728
  %762 = vst.msk [vmem:[%s3 + $0xd0] sm:$0xff] %vm735, %v729
  %763 = vst.msk [vmem:[%s3 + $0xd8] sm:$0xff] %vm735, %v730
  %764 = vst.msk [vmem:[%s3 + $0xe0] sm:$0xff] %vm735, %v731
  %765 = vst.msk [vmem:[%s3 + $0xe8] sm:$0xff] %vm735, %v732
  %766 = vst.msk [vmem:[%s3 + $0xf0] sm:$0xff] %vm735, %v733
  %767 = vst.msk [vmem:[%s3 + $0xf8] sm:$0xff] %vm735, %v734
  // Predicated region
  $region14: #{tpu_custom_call.1} parent=0 // pred_check
    _
  $region15: #{tpu_custom_call.1} parent=0 // pred_check_branch
    %769 = sbr.rel (0) target = $region17
  $region16: #{tpu_custom_call.1} parent=0 // pred_region
    _
  $region17: #{tpu_custom_call.1} parent=0 // pred_fallthru
    _
  // Predicated region
  $region18: #{tpu_custom_call.1} parent=0 // pred_check
    _
  $region19: #{tpu_custom_call.1} parent=0 // pred_check_branch
    %771 = sbr.rel (0) target = $region21
  $region20: #{tpu_custom_call.1} parent=0 // pred_region
    _
  $region21: #{tpu_custom_call.1} parent=0 // pred_fallthru
    _

</llo_original>
